<compile_context>
chip_gen: v6e
topology: v6e:2x2x1
jax: 0.10.0
libtpu: 0.0.40
codegen_flags: <defaults>
</compile_context>

<pallas_src>
import math
import functools

import jax
import jax.numpy as jnp
from jax.experimental import pallas as pl
from jax.experimental.pallas import tpu as pltpu

# ---- model config (from the PyTorch spec) ----------------------------------
d_k = d_v = 64
d_model = 512
n_heads = 8
d_ff = 2048
n_layers = 6                # spec value; the demo below uses 2 layers for speed
target_vocab_size = 32


# -----------------------------------------------------------------------------
# tiling helpers
# -----------------------------------------------------------------------------
def _row_tile(n, cap=256):
    """Largest multiple-of-8 divisor of n that is <= cap (or n if already small)."""
    if n <= cap:
        return n
    for t in range(cap - cap % 8, 0, -8):
        if n % t == 0:
            return t
    return n


def _col_tile(n, cap=512):
    """Largest multiple-of-128 divisor of n that is <= cap (or n if already small)."""
    if n <= cap:
        return n
    for t in range(cap - cap % 128, 0, -128):
        if n % t == 0:
            return t
    return n


# -----------------------------------------------------------------------------
# Kernel 1: positional encoding add (+ optional inverted dropout)
# x laid out [B, S, D]; blocks are (1, TS, D) so sublane=TS, lane=D are dense.
# -----------------------------------------------------------------------------
def _pe_kernel(x_ref, pe_ref, o_ref):
    o_ref[...] = x_ref[...] + pe_ref[...][None]


def _pe_dropout_kernel(x_ref, pe_ref, keep_ref, o_ref, *, keep_scale):
    y = (x_ref[...] + pe_ref[...][None]) * keep_ref[...]
    o_ref[...] = y * keep_scale


def positional_encoding(x, pe, *, dropout_p=0.1, training=False, rng_key=None):
    """x: [B, S, D]; pe: [S, D].  Returns x + pe (broadcast over batch), with
    inverted dropout when training."""
    B, S, D = x.shape
    TS = _row_tile(S, cap=512)            # keep each block ~<= 1-2 MiB
    grid = (B, S // TS)
    x_spec = pl.BlockSpec((1, TS, D), lambda b, s: (b, s, 0))
    pe_spec = pl.BlockSpec((TS, D), lambda b, s: (s, 0))

    apply_dropout = training and dropout_p > 0.0 and rng_key is not None
    if apply_dropout:
        keep = jax.random.bernoulli(rng_key, 1.0 - dropout_p, x.shape).astype(x.dtype)
        kernel = functools.partial(_pe_dropout_kernel,
                                   keep_scale=1.0 / (1.0 - dropout_p))
        in_specs = [x_spec, pe_spec, x_spec]
        args = (x, pe, keep)
    else:
        kernel = _pe_kernel
        in_specs = [x_spec, pe_spec]
        args = (x, pe)

    return pl.pallas_call(
        kernel,
        out_shape=jax.ShapeDtypeStruct(x.shape, x.dtype),
        grid=grid,
        in_specs=in_specs,
        out_specs=x_spec,
        input_output_aliases={0: 0},      # elementwise & shape-preserving: reuse x
        compiler_params=pltpu.CompilerParams(
            dimension_semantics=("parallel", "parallel")),
    )(*args)


# -----------------------------------------------------------------------------
# Kernel 2: tiled matmul with f32 accumulator (+ optional fused ReLU)
# -----------------------------------------------------------------------------
def _matmul_kernel(a_ref, b_ref, o_ref, acc_ref, *, activation):
    @pl.when(pl.program_id(2) == 0)
    def _():
        acc_ref[...] = jnp.zeros_like(acc_ref)

    acc_ref[...] += jnp.dot(a_ref[...], b_ref[...],
                            preferred_element_type=jnp.float32)

    @pl.when(pl.program_id(2) == pl.num_programs(2) - 1)
    def _():
        y = acc_ref[...]
        if activation == "relu":
            y = jnp.maximum(y, 0.0)
        o_ref[...] = y.astype(o_ref.dtype)


def matmul(a, b, activation=None):
    M, K = a.shape
    K2, N = b.shape
    assert K == K2
    tm = _row_tile(M, cap=256)
    tn = _col_tile(N, cap=512)
    tk = _col_tile(K, cap=512)
    grid = (M // tm, N // tn, K // tk)
    return pl.pallas_call(
        functools.partial(_matmul_kernel, activation=activation),
        out_shape=jax.ShapeDtypeStruct((M, N), a.dtype),
        grid=grid,
        in_specs=[pl.BlockSpec((tm, tk), lambda i, j, k: (i, k)),
                  pl.BlockSpec((tk, tn), lambda i, j, k: (k, j))],
        out_specs=pl.BlockSpec((tm, tn), lambda i, j, k: (i, j)),
        scratch_shapes=[pltpu.VMEM((tm, tn), jnp.float32)],
        compiler_params=pltpu.CompilerParams(
            dimension_semantics=("parallel", "parallel", "arbitrary")),
    )(a, b)


# -----------------------------------------------------------------------------
# Kernel 3: fused scaled-dot-product attention per (batch, head)
# -----------------------------------------------------------------------------
def _attention_kernel(q_ref, k_ref, v_ref, mask_ref, ctx_ref, attn_ref, *, scale):
    q = q_ref[0, 0].astype(jnp.float32)           # (Lq, d_k)
    k = k_ref[0, 0].astype(jnp.float32)           # (Lk, d_k)
    v = v_ref[0, 0].astype(jnp.float32)           # (Lk, d_v)
    mask = mask_ref[0]                            # (Lq, Lk) int32; 1 => masked

    # scores = Q @ K^T * 1/sqrt(d_k)  (contract d_k directly, no transpose)
    scores = jax.lax.dot_general(q, k, (((1,), (1,)), ((), ())),
                                 preferred_element_type=jnp.float32) * scale
    scores = jnp.where(mask > 0, jnp.float32(-1e9), scores)

    m = jnp.max(scores, axis=-1, keepdims=True)
    e = jnp.exp(scores - m)
    attn = e / jnp.sum(e, axis=-1, keepdims=True)
    ctx = jnp.dot(attn, v, preferred_element_type=jnp.float32)

    ctx_ref[0, 0] = ctx.astype(ctx_ref.dtype)
    attn_ref[0, 0] = attn.astype(attn_ref.dtype)


def scaled_dot_product_attention(Q, K, V, mask, *, scale):
    B, H, Lq, dk = Q.shape
    Lk, dv = K.shape[2], V.shape[3]
    q_spec = pl.BlockSpec((1, 1, Lq, dk), lambda b, h: (b, h, 0, 0))
    k_spec = pl.BlockSpec((1, 1, Lk, dk), lambda b, h: (b, h, 0, 0))
    v_spec = pl.BlockSpec((1, 1, Lk, dv), lambda b, h: (b, h, 0, 0))
    m_spec = pl.BlockSpec((1, Lq, Lk), lambda b, h: (b, 0, 0))
    ctx_spec = pl.BlockSpec((1, 1, Lq, dv), lambda b, h: (b, h, 0, 0))
    attn_spec = pl.BlockSpec((1, 1, Lq, Lk), lambda b, h: (b, h, 0, 0))
    return pl.pallas_call(
        functools.partial(_attention_kernel, scale=scale),
        out_shape=(jax.ShapeDtypeStruct((B, H, Lq, dv), Q.dtype),
                   jax.ShapeDtypeStruct((B, H, Lq, Lk), jnp.float32)),
        grid=(B, H),
        in_specs=[q_spec, k_spec, v_spec, m_spec],
        out_specs=(ctx_spec, attn_spec),
        compiler_params=pltpu.CompilerParams(
            dimension_semantics=("parallel", "parallel")),
    )(Q, K, V, mask)


# -----------------------------------------------------------------------------
# Kernel 4: residual add + LayerNorm (gamma=1, beta=0, eps=1e-5)
# -----------------------------------------------------------------------------
def _add_ln_kernel(x_ref, r_ref, o_ref, *, eps):
    y = x_ref[...].astype(jnp.float32) + r_ref[...].astype(jnp.float32)
    mean = jnp.mean(y, axis=-1, keepdims=True)
    c = y - mean
    var = jnp.mean(c * c, axis=-1, keepdims=True)
    o_ref[...] = (c * jax.lax.rsqrt(var + eps)).astype(o_ref.dtype)


def add_layernorm(x, residual, *, eps=1e-5):
    M, D = x.shape
    tm = _row_tile(M, cap=256)
    spec = pl.BlockSpec((tm, D), lambda i: (i, 0))
    return pl.pallas_call(
        functools.partial(_add_ln_kernel, eps=eps),
        out_shape=jax.ShapeDtypeStruct((M, D), x.dtype),
        grid=(M // tm,),
        in_specs=[spec, spec],
        out_specs=spec,
        compiler_params=pltpu.CompilerParams(dimension_semantics=("parallel",)),
    )(x, residual)


# -----------------------------------------------------------------------------
# Module assembly (wrappers around the kernels)
# -----------------------------------------------------------------------------
def multi_head_attention(x_q, x_kv, mask, p):
    B, Lq, D = x_q.shape
    Lk = x_kv.shape[1]
    q2 = matmul(x_q.reshape(B * Lq, D), p["wq"])
    k2 = matmul(x_kv.reshape(B * Lk, D), p["wk"])
    v2 = matmul(x_kv.reshape(B * Lk, D), p["wv"])
    Q = q2.reshape(B, Lq, n_heads, d_k).transpose(0, 2, 1, 3)
    K = k2.reshape(B, Lk, n_heads, d_k).transpose(0, 2, 1, 3)
    V = v2.reshape(B, Lk, n_heads, d_v).transpose(0, 2, 1, 3)
    ctx, attn = scaled_dot_product_attention(Q, K, V, mask,
                                             scale=1.0 / math.sqrt(d_k))
    ctx2 = ctx.transpose(0, 2, 1, 3).reshape(B * Lq, n_heads * d_v)
    out = matmul(ctx2, p["wo"])
    y = add_layernorm(out, x_q.reshape(B * Lq, D))
    return y.reshape(B, Lq, D), attn


def poswise_ffn(x, p):
    B, L, D = x.shape
    h = matmul(x.reshape(B * L, D), p["w1"], activation="relu")
    out = matmul(h, p["w2"])
    y = add_layernorm(out, x.reshape(B * L, D))
    return y.reshape(B, L, D)


def make_positional_encoding_table(max_len, dm):
    pos = jnp.arange(max_len, dtype=jnp.float32)[:, None]
    div = jnp.exp(jnp.arange(0, dm, 2, dtype=jnp.float32) * (-math.log(10000.0) / dm))
    pe = jnp.zeros((max_len, dm), jnp.float32)
    pe = pe.at[:, 0::2].set(jnp.sin(pos * div))
    pe = pe.at[:, 1::2].set(jnp.cos(pos * div))
    return pe


def get_attn_pad_mask(seq_q, seq_k):
    B, Lq = seq_q.shape
    Lk = seq_k.shape[1]
    pad = (seq_k == 0).astype(jnp.int32)[:, None, :]
    return jnp.broadcast_to(pad, (B, Lq, Lk))


def get_attn_subsequence_mask(seq):
    B, L = seq.shape
    sub = jnp.triu(jnp.ones((L, L), jnp.int32), k=1)
    return jnp.broadcast_to(sub[None], (B, L, L))


def init_decoder_params(key, num_layers, vocab=target_vocab_size, max_len=512):
    def lin(k, fan_in, fan_out):
        return jax.random.normal(k, (fan_in, fan_out), jnp.float32) / math.sqrt(fan_in)

    k_emb, key = jax.random.split(key)
    params = {"tgt_emb": jax.random.normal(k_emb, (vocab, d_model), jnp.float32) * 0.1,
              "pe": make_positional_encoding_table(max_len, d_model),
              "layers": []}
    for _ in range(num_layers):
        ks = jax.random.split(key, 11)
        key = ks[0]
        params["layers"].append({
            "self_attn": {"wq": lin(ks[1], d_model, n_heads * d_k),
                          "wk": lin(ks[2], d_model, n_heads * d_k),
                          "wv": lin(ks[3], d_model, n_heads * d_v),
                          "wo": lin(ks[4], n_heads * d_v, d_model)},
            "enc_attn": {"wq": lin(ks[5], d_model, n_heads * d_k),
                         "wk": lin(ks[6], d_model, n_heads * d_k),
                         "wv": lin(ks[7], d_model, n_heads * d_v),
                         "wo": lin(ks[8], n_heads * d_v, d_model)},
            "ffn": {"w1": lin(ks[9], d_model, d_ff),
                    "w2": lin(ks[10], d_ff, d_model)},
        })
    return params


def decoder_forward(dec_inputs, enc_inputs, enc_outputs, params, *,
                    dropout_p=0.1, training=False, dropout_key=None):
    B, T = dec_inputs.shape
    # TODO(synk): embedding gather stays in plain JAX (jnp.take); a scalar-prefetch
    # Pallas gather is possible but adds nothing at these sizes.
    emb = jnp.take(params["tgt_emb"], dec_inputs, axis=0)             # [B, T, D]
    x = positional_encoding(emb, params["pe"][:T], dropout_p=dropout_p,
                            training=training, rng_key=dropout_key)
    # attention masks — tiny compare/index glue, plain JAX
    self_mask = ((get_attn_pad_mask(dec_inputs, dec_inputs)
                  + get_attn_subsequence_mask(dec_inputs)) > 0).astype(jnp.int32)
    enc_mask = get_attn_pad_mask(dec_inputs, enc_inputs)

    self_attns, enc_attns = [], []
    for lp in params["layers"]:
        x, sa = multi_head_attention(x, x, self_mask, lp["self_attn"])
        x, ea = multi_head_attention(x, enc_outputs, enc_mask, lp["enc_attn"])
        x = poswise_ffn(x, lp["ffn"])
        self_attns.append(sa)
        enc_attns.append(ea)
    return x, self_attns, enc_attns


# -----------------------------------------------------------------------------
# Pure-JAX reference (for numerical validation of the kernels)
# -----------------------------------------------------------------------------
def _reference_decoder(dec_inputs, enc_inputs, enc_outputs, params):
    B, T = dec_inputs.shape
    x = jnp.take(params["tgt_emb"], dec_inputs, axis=0) + params["pe"][:T][None]
    self_mask = ((get_attn_pad_mask(dec_inputs, dec_inputs)
                  + get_attn_subsequence_mask(dec_inputs)) > 0)
    enc_mask = get_attn_pad_mask(dec_inputs, enc_inputs) > 0

    def ln(y):
        m = jnp.mean(y, -1, keepdims=True)
        v = jnp.mean((y - m) ** 2, -1, keepdims=True)
        return (y - m) / jnp.sqrt(v + 1e-5)

    def mha(xq, xkv, mask, p):
        Lq, Lk = xq.shape[1], xkv.shape[1]
        q = (xq @ p["wq"]).reshape(B, Lq, n_heads, d_k).transpose(0, 2, 1, 3)
        k = (xkv @ p["wk"]).reshape(B, Lk, n_heads, d_k).transpose(0, 2, 1, 3)
        v = (xkv @ p["wv"]).reshape(B, Lk, n_heads, d_v).transpose(0, 2, 1, 3)
        s = jnp.einsum("bhqd,bhkd->bhqk", q, k) / math.sqrt(d_k)
        s = jnp.where(mask[:, None], -1e9, s)
        a = jax.nn.softmax(s, axis=-1)
        c = jnp.einsum("bhqk,bhkd->bhqd", a, v)
        c = c.transpose(0, 2, 1, 3).reshape(B, Lq, n_heads * d_v)
        return ln(c @ p["wo"] + xq)

    def ffn(y, p):
        return ln(jnp.maximum(y @ p["w1"], 0.0) @ p["w2"] + y)

    for lp in params["layers"]:
        x = mha(x, x, self_mask, lp["self_attn"])
        x = mha(x, enc_outputs, enc_mask, lp["enc_attn"])
        x = ffn(x, lp["ffn"])
    return x


# -----------------------------------------------------------------------------
# Demo / smoke test
# -----------------------------------------------------------------------------
if __name__ == "__main__":
    B, T, S = 2, 8, 8
    NUM_LAYERS = 2          # spec uses n_layers=6; 2 keeps this smoke test fast

    root = jax.random.PRNGKey(0)
    k_par, k_dec, k_enc, k_encout, k_drop = jax.random.split(root, 5)
    params = init_decoder_params(k_par, NUM_LAYERS)
    dec_inputs = jax.random.randint(k_dec, (B, T), 0, target_vocab_size)
    enc_inputs = jax.random.randint(k_enc, (B, S), 0, target_vocab_size)
    enc_outputs = jax.random.normal(k_encout, (B, S, d_model), jnp.float32)

    # eval-mode forward pass through the Pallas kernels
    dec_out, self_attns, enc_attns = decoder_forward(
        dec_inputs, enc_inputs, enc_outputs, params, training=False)
    dec_out = jax.block_until_ready(dec_out)
    assert dec_out.shape == (B, T, d_model)
    assert len(self_attns) == NUM_LAYERS
    assert self_attns[0].shape == (B, n_heads, T, T)
    assert enc_attns[0].shape == (B, n_heads, T, S)

    # numerical check against a pure-JAX reference of the same forward pass
    ref = _reference_decoder(dec_inputs, enc_inputs, enc_outputs, params)
    max_err = float(jnp.max(jnp.abs(dec_out - ref)))
    assert jnp.allclose(dec_out, ref, atol=2e-3, rtol=2e-3), max_err

    # exercise the fused PE + dropout (training) path once
    emb = jnp.take(params["tgt_emb"], dec_inputs, axis=0)
    y_drop = positional_encoding(emb, params["pe"][:T], dropout_p=0.1,
                                 training=True, rng_key=k_drop)
    y_drop = jax.block_until_ready(y_drop)
    assert y_drop.shape == (B, T, d_model)

    print("KERNEL_OK")
</pallas_src>

<mosaic_0001>
module attributes {stable_mosaic.version = 11 : i64} {
  func.func @_pe_kernel(%arg0: i32, %arg1: i32, %arg2: memref<1x8x512xf32, #tpu.memory_space<vmem>>, %arg3: memref<8x512xf32, #tpu.memory_space<vmem>>, %arg4: memref<1x8x512xf32, #tpu.memory_space<vmem>>) attributes {dimension_semantics = [#tpu.dimension_semantics<parallel>, #tpu.dimension_semantics<parallel>], iteration_bounds = array<i64: 2, 1>, scalar_prefetch = 0 : i64, scratch_operands = 0 : i64, tpu.core_type = #tpu.core_type<tc>, window_params = [{transform_indices = @transform_0, window_bounds = array<i64: 1, 8, 512>}, {transform_indices = @transform_1, window_bounds = array<i64: 8, 512>}, {transform_indices = @transform_2, window_bounds = array<i64: 1, 8, 512>}]} {
    %c0 = arith.constant 0 : index
    %c0_0 = arith.constant 0 : index
    %c0_1 = arith.constant 0 : index
    %0 = vector.load %arg2[%c0, %c0_0, %c0_1] : memref<1x8x512xf32, #tpu.memory_space<vmem>>, vector<1x8x512xf32>
    %c0_2 = arith.constant 0 : index
    %c0_3 = arith.constant 0 : index
    %1 = vector.load %arg3[%c0_2, %c0_3] : memref<8x512xf32, #tpu.memory_space<vmem>>, vector<8x512xf32>
    %2 = vector.shape_cast %1 : vector<8x512xf32> to vector<1x8x512xf32>
    %3 = arith.addf %0, %2 : vector<1x8x512xf32>
    %c0_4 = arith.constant 0 : index
    %c0_5 = arith.constant 0 : index
    %c0_6 = arith.constant 0 : index
    %4 = vector.load %arg4[%c0_4, %c0_5, %c0_6] : memref<1x8x512xf32, #tpu.memory_space<vmem>>, vector<1x8x512xf32>
    tpu.vector_store %arg4[%c0_4, %c0_5, %c0_6], %3 {strides = array<i32>} : memref<1x8x512xf32, #tpu.memory_space<vmem>>, vector<1x8x512xf32>,
    return
  }
  func.func @transform_0(%arg0: i32, %arg1: i32) -> (i32, i32, i32) {
    %c0_i32 = arith.constant 0 : i32
    %c0_i32_0 = arith.constant 0 : i32
    return %arg0, %arg1, %c0_i32 : i32, i32, i32
  }
  func.func @transform_1(%arg0: i32, %arg1: i32) -> (i32, i32) {
    %c0_i32 = arith.constant 0 : i32
    %c0_i32_0 = arith.constant 0 : i32
    return %arg1, %c0_i32 : i32, i32
  }
  func.func @transform_2(%arg0: i32, %arg1: i32) -> (i32, i32, i32) {
    %c0_i32 = arith.constant 0 : i32
    %c0_i32_0 = arith.constant 0 : i32
    return %arg0, %arg1, %c0_i32 : i32, i32, i32
  }
}

</mosaic_0001>

<llo_original>
// kernel: tpu_custom_call.1
$region0: #{tpu_custom_call.1}
  #allocation0 [shape = 'u32[]', space=smem, size = 0x4, offset = 0x4, fixed_abs, tag = 'smem constant byte address 0x4 - core index']
  #allocation1 [shape = 'u32[144,128]{1,0:T(1,128)}', space=vmem, size = 0x12000, scoped, tag = 'internal scratch']
  %s0 = inlined_call_operand.hbm [shape: f32[2,8,512], index: 0, kind: input, shape index: {}, may-alias: {0,2}]
  %s1 = inlined_call_operand.vmem [shape: f32[8,512], index: 1, kind: input, shape index: {}]
  %s2 = inlined_call_operand.hbm [shape: f32[2,8,512], index: 2, kind: output, shape index: {}, may-alias: {0,2}]
  %s3 = sld [smem:[#allocation0]]
  $region45: #{tpu_custom_call.1} parent=0
    _
  %s5 = ssub.s32 1, %s3
  %s6 = scalar_select 0, %s5, %s3
  $region1: #{tpu_custom_call.1} parent=0
    #allocation2 [shape = 'u8[32768]{0}', space=vmem, size = 0x8000, scoped, tag = 'input window, operand 0']
    #allocation3 [shape = 's32[2]{0}', space=sflag, size = 0x8, scoped, tag = 'scoped memory for tpu_custom_call.1']
    #allocation4 [shape = 's32[2]{0}', space=sflag, size = 0x8, scoped, tag = 'scoped memory for tpu_custom_call.1']
    #allocation5 [shape = 'u8[32768]{0}', space=vmem, size = 0x8000, scoped, tag = 'output window, operand 0']
    %7 = vsyncpa [#allocation3], 0
    %s8 = scalar_lea.sflag [#allocation3], 1
    %9 = vsyncpa %s8, 0
    %10 = vsyncpa [#allocation4], 0
    %s11 = scalar_lea.sflag [#allocation4], 1
    %12 = vsyncpa %s11, 0
    loop: start=0, step=1, limit=4
    $region2: #{tpu_custom_call.1} parent=1 // loop_pre_header
      _
    $region3: #{tpu_custom_call.1} parent=1 // loop_header
      %s14 = sphi 0, %s18
      %p15 = scmp.ge.s32.totalorder %s14, 4
      %s21 = sphi 0, %s33
      %s22 = sphi 0, %s29
      %s23 = sphi 0, %s21
      %s24 = sphi 0, %s22
      %s25 = sphi 0, %s23
      %s26 = sphi 0, %s24
      %s38 = sphi 0, %s40
      %s41 = sphi 0, %s38
      %s42 = sphi 0, %s41
      %s58 = sphi 0, %s42
      %s64 = sphi 0, %s66
      %s67 = sphi 0, %s64
      %s68 = sphi 0, %s67
      %s84 = sphi 0, %s68
      %s92 = sphi 0, %s94
      %s95 = sphi 0, %s92
      %s96 = sphi 0, %s95
      %s112 = sphi 0, %s96
    $region4: #{tpu_custom_call.1} parent=1 // loop_header_branch
      %17 = sbr.rel (%p15) target = $region8
    $region5: #{tpu_custom_call.1} parent=1 // loop_body
      %s19 = ssub.s32 %s14, 1
      %s20 = ssub.s32 %s14, 2
      %s27 = sadd.s32 1, %s22
      %p28 = scmp.ge.s32.totalorder %s27, 1
      %s29 = scalar_select %p28, 0, %s27
      %s30 = sadd.s32 1, %s21
      %s31 = scalar_select %p28, %s30, %s21
      %p32 = scmp.ge.s32.totalorder %s31, 2
      %s33 = scalar_select %p32, 0, %s31
      %s34 = ssub.s32 %s21, %s33
      %s35 = ssub.s32 %s22, %s29
      %s36 = sor.u32 %s34, %s35
      %p37 = scmp.eq.s32.totalorder %s36, 0
      %s39 = sadd.s32 %s38, 1
      %s40 = scalar_select %p37, %s38, %s39
      %p43 = pneg %p37
      %p44 = scmp.eq.s32.totalorder %s14, 1
      %p45 = por %p43, %p44
      %p46 = scmp.ne.s32.totalorder %s38, %s41
      %p47 = scmp.eq.s32.totalorder %s14, 0
      %p48 = por %p46, %p47
      %p49 = scmp.ne.s32.totalorder %s38, %s41
      %p50 = scmp.eq.s32.totalorder %s19, 1
      %p51 = por %p49, %p50
      %p52 = scmp.ne.s32.totalorder %s41, %s42
      %p53 = scmp.eq.s32.totalorder %s19, 0
      %p54 = por %p52, %p53
      %p55 = scmp.ne.s32.totalorder %s41, %s42
      %p56 = scmp.eq.s32.totalorder %s20, 1
      %p57 = por %p55, %p56
      %p59 = scmp.ne.s32.totalorder %s42, %s58
      %p60 = scmp.eq.s32.totalorder %s20, 0
      %p61 = por %p59, %p60
      %s62 = ssub.s32 %s22, %s29
      %p63 = scmp.eq.s32.totalorder %s62, 0
      %s65 = sadd.s32 %s64, 1
      %s66 = scalar_select %p63, %s64, %s65
      %p69 = pneg %p63
      %p70 = scmp.eq.s32.totalorder %s14, 1
      %p71 = por %p69, %p70
      %p72 = scmp.ne.s32.totalorder %s64, %s67
      %p73 = scmp.eq.s32.totalorder %s14, 0
      %p74 = por %p72, %p73
      %p75 = scmp.ne.s32.totalorder %s64, %s67
      %p76 = scmp.eq.s32.totalorder %s19, 1
      %p77 = por %p75, %p76
      %p78 = scmp.ne.s32.totalorder %s67, %s68
      %p79 = scmp.eq.s32.totalorder %s19, 0
      %p80 = por %p78, %p79
      %p81 = scmp.ne.s32.totalorder %s67, %s68
      %p82 = scmp.eq.s32.totalorder %s20, 1
      %p83 = por %p81, %p82
      %p85 = scmp.ne.s32.totalorder %s68, %s84
      %p86 = scmp.eq.s32.totalorder %s20, 0
      %p87 = por %p85, %p86
      %s88 = ssub.s32 %s21, %s33
      %s89 = ssub.s32 %s22, %s29
      %s90 = sor.u32 %s88, %s89
      %p91 = scmp.eq.s32.totalorder %s90, 0
      %s93 = sadd.s32 %s92, 1
      %s94 = scalar_select %p91, %s92, %s93
      %p97 = pneg %p91
      %p98 = scmp.eq.s32.totalorder %s14, 1
      %p99 = por %p97, %p98
      %p100 = scmp.ne.s32.totalorder %s92, %s95
      %p101 = scmp.eq.s32.totalorder %s14, 0
      %p102 = por %p100, %p101
      %p103 = scmp.ne.s32.totalorder %s92, %s95
      %p104 = scmp.eq.s32.totalorder %s19, 1
      %p105 = por %p103, %p104
      %p106 = scmp.ne.s32.totalorder %s95, %s96
      %p107 = scmp.eq.s32.totalorder %s19, 0
      %p108 = por %p106, %p107
      %p109 = scmp.ne.s32.totalorder %s95, %s96
      %p110 = scmp.eq.s32.totalorder %s20, 1
      %p111 = por %p109, %p110
      %p113 = scmp.ne.s32.totalorder %s96, %s112
      %p114 = scmp.eq.s32.totalorder %s20, 0
      %p115 = por %p113, %p114
      %p116 = scmp.le.s32.totalorder 1, %s14
      %p117 = scmp.lt.s32.totalorder %s14, 3
      %p118 = pnand %p116, %p117
      %p119 = pneg %p118
      // Predicated region
      $region9: #{tpu_custom_call.1} parent=5 // pred_check
        _
      $region10: #{tpu_custom_call.1} parent=5 // pred_check_branch
        %121 = sbr.rel (%p118) target = $region12
      $region11: #{tpu_custom_call.1} parent=5 // pred_region
        %s122 = ssub.s32 %s14, 1
        // Predicated region
        $region13: #{tpu_custom_call.1} parent=11 // pred_check
          %p123 = pneg %p80
        $region14: #{tpu_custom_call.1} parent=11 // pred_check_branch
          %125 = sbr.rel (%p123) target = $region16
        $region15: #{tpu_custom_call.1} parent=11 // pred_region
          %p126 = scmp.lt.s32.totalorder %s24, 0
          %s127 = scalar_select %p126, %s24, 0
          %s128 = smul.addr %s127, 4
          %s129 = smul.addr %s128, 8
          %s130 = scalar_lea.vmem %s1, %s129
        $region16: #{tpu_custom_call.1} parent=11 // pred_fallthru
          _
      $region12: #{tpu_custom_call.1} parent=5 // pred_fallthru
        _
      %p131 = scmp.lt.s32.totalorder %s14, 2
      // Predicated region
      $region17: #{tpu_custom_call.1} parent=5 // pred_check
        %p132 = pneg %p131
      $region18: #{tpu_custom_call.1} parent=5 // pred_check_branch
        %134 = sbr.rel (%p132) target = $region20
      $region19: #{tpu_custom_call.1} parent=5 // pred_region
        // Predicated region
        $region21: #{tpu_custom_call.1} parent=19 // pred_check
          %p135 = pneg %p48
        $region22: #{tpu_custom_call.1} parent=19 // pred_check_branch
          %137 = sbr.rel (%p135) target = $region24
        $region23: #{tpu_custom_call.1} parent=19 // pred_region
          %s138 = sand.u32 %s38, 1
          %s139 = scalar_lea.sflag [#allocation3], %s138
          %s140 = sand.u32 %s38, 1
          %s141 = smul.addr %s140, 32
          %s142 = scalar_lea.vmem [#allocation2], %s141
          %s144 = ssub.s32 512, 512
          %145 = vsyncadd %s139, %s144
          %s146 = smul.addr %s22, 4
          %s147 = smul.addr %s21, 4
          %s148 = sadd.s32 %s146, %s147
          %s149 = smul.addr %s148, 128
          %s150 = scalar_lea.hbm %s0, %s149
          %s152 = sshll.u32 %s142, 4
          %s153 = int_to_ptr.vmem [resolvable:$true] %s152
          %155 = dma.hbm_to_vmem [thread:$0]  %s150, 512, %s153, %s139
        $region24: #{tpu_custom_call.1} parent=19 // pred_fallthru
          _
      $region20: #{tpu_custom_call.1} parent=5 // pred_fallthru
        _
      %p156 = scmp.le.s32.totalorder 1, %s14
      %p157 = scmp.lt.s32.totalorder %s14, 3
      %p158 = pnand %p156, %p157
      %p159 = pneg %p158
      // Predicated region
      $region25: #{tpu_custom_call.1} parent=5 // pred_check
        _
      $region26: #{tpu_custom_call.1} parent=5 // pred_check_branch
        %161 = sbr.rel (%p158) target = $region28
      $region27: #{tpu_custom_call.1} parent=5 // pred_region
        %s162 = ssub.s32 %s14, 1
        %s163 = sand.u32 %s41, 1
        %s164 = scalar_lea.sflag [#allocation3], %s163
        %s165 = sand.u32 %s41, 1
        %s166 = smul.addr %s165, 32
        %s167 = scalar_lea.vmem [#allocation2], %s166
        // Predicated region
        $region29: #{tpu_custom_call.1} parent=27 // pred_check
          %p168 = pneg %p54
        $region30: #{tpu_custom_call.1} parent=27 // pred_check_branch
          %170 = sbr.rel (%p168) target = $region32
        $region31: #{tpu_custom_call.1} parent=27 // pred_region
          %171 = dma.done %s164, 512
        $region32: #{tpu_custom_call.1} parent=27 // pred_fallthru
          _
        %s172 = sand.u32 %s41, 1
        %s173 = scalar_lea.sflag [#allocation3], %s172
        %s174 = sand.u32 %s41, 1
        %s175 = smul.addr %s174, 32
        %s176 = scalar_lea.vmem [#allocation2], %s175
        %p177 = pneg %p54
        %p178 = pneg %p51
        %p179 = scmp.lt.s32.totalorder %s24, 0
        %s180 = scalar_select %p179, %s24, 0
        %s181 = smul.addr %s180, 4
        %s182 = smul.addr %s181, 8
        %s183 = scalar_lea.vmem %s1, %s182
        %p184 = pneg %p80
        %p185 = pneg %p77
        %p186 = pneg %p108
        %p187 = pneg %p105
        %s188 = sand.u32 %s95, 1
        %s189 = scalar_lea.sflag [#allocation4], %s188
        %s190 = sand.u32 %s95, 1
        %s191 = smul.addr %s190, 32
        %s192 = scalar_lea.vmem [#allocation5], %s191
        %p193 = scmp.lt.s32.totalorder %s24, 0
        %s194 = scalar_select %p193, %s24, 0
        %s195 = smul.addr %s194, 4
        %s196 = smul.addr %s195, 8
        %s197 = scalar_lea.vmem %s1, %s196
        %v198 = vld [vmem:[%s167] sm:$0xff]
        %v199 = vld [vmem:[%s167 + $0x8] sm:$0xff]
        %v200 = vld [vmem:[%s167 + $0x10] sm:$0xff]
        %v201 = vld [vmem:[%s167 + $0x18] sm:$0xff]
        %v202 = vld [vmem:[%s197] sm:$0xff]
        %v203 = vld [vmem:[%s197 + $0x8] sm:$0xff]
        %v204 = vld [vmem:[%s197 + $0x10] sm:$0xff]
        %v205 = vld [vmem:[%s197 + $0x18] sm:$0xff]
        %v206 = vadd.f32 %v198, %v202
        %v207 = vadd.f32 %v199, %v203
        %v208 = vadd.f32 %v200, %v204
        %v209 = vadd.f32 %v201, %v205
        %210 = vst [vmem:[%s192] sm:$0xff] %v206
        %211 = vst [vmem:[%s192 + $0x8] sm:$0xff] %v207
        %212 = vst [vmem:[%s192 + $0x10] sm:$0xff] %v208
        %213 = vst [vmem:[%s192 + $0x18] sm:$0xff] %v209
        %s214 = sand.u32 %s95, 1
        %s215 = scalar_lea.sflag [#allocation4], %s214
        %s216 = sand.u32 %s95, 1
        %s217 = smul.addr %s216, 32
        %s218 = scalar_lea.vmem [#allocation5], %s217
        // Predicated region
        $region33: #{tpu_custom_call.1} parent=27 // pred_check
          %p219 = pneg %p105
        $region34: #{tpu_custom_call.1} parent=27 // pred_check_branch
          %221 = sbr.rel (%p219) target = $region36
        $region35: #{tpu_custom_call.1} parent=27 // pred_region
          %s223 = ssub.s32 512, 512
          %224 = vsyncadd %s215, %s223
          %s225 = smul.addr %s24, 4
          %s226 = smul.addr %s23, 4
          %s227 = sadd.s32 %s225, %s226
          %s228 = smul.addr %s227, 128
          %s229 = scalar_lea.hbm %s2, %s228
          %s231 = sshll.u32 %s218, 4
          %s232 = int_to_ptr.vmem [resolvable:$true] %s231
          %234 = dma.vmem_to_hbm [thread:$0]  %s232, 512, %s229, %s215
        $region36: #{tpu_custom_call.1} parent=27 // pred_fallthru
          _
      $region28: #{tpu_custom_call.1} parent=5 // pred_fallthru
        _
      %p235 = scmp.le.s32.totalorder 2, %s14
      // Predicated region
      $region37: #{tpu_custom_call.1} parent=5 // pred_check
        %p236 = pneg %p235
      $region38: #{tpu_custom_call.1} parent=5 // pred_check_branch
        %238 = sbr.rel (%p236) target = $region40
      $region39: #{tpu_custom_call.1} parent=5 // pred_region
        %s239 = ssub.s32 %s14, 2
        // Predicated region
        $region41: #{tpu_custom_call.1} parent=39 // pred_check
          %p240 = pneg %p111
        $region42: #{tpu_custom_call.1} parent=39 // pred_check_branch
          %242 = sbr.rel (%p240) target = $region44
        $region43: #{tpu_custom_call.1} parent=39 // pred_region
          %s243 = sand.u32 %s96, 1
          %s244 = scalar_lea.sflag [#allocation4], %s243
          %s245 = sand.u32 %s96, 1
          %s246 = smul.addr %s245, 32
          %s247 = scalar_lea.vmem [#allocation5], %s246
          %248 = dma.done %s244, 512
        $region44: #{tpu_custom_call.1} parent=39 // pred_fallthru
          _
      $region40: #{tpu_custom_call.1} parent=5 // pred_fallthru
        _
    $region6: #{tpu_custom_call.1} parent=1 // loop_footer
      %s18 = sadd.s32 1, %s14
    $region7: #{tpu_custom_call.1} parent=1 // loop_footer_branch
      %13 = sbr.rel target = $region3
    $region8: #{tpu_custom_call.1} parent=1 // loop_exit
      _
    %249 = vsyncpa [#allocation3], 1
    %s250 = scalar_lea.sflag [#allocation3], 1
    %251 = vsyncpa %s250, 1
    %252 = vsyncpa [#allocation4], 1
    %s253 = scalar_lea.sflag [#allocation4], 1
    %254 = vsyncpa %s253, 1

</llo_original>
